<compile_context>
chip_gen: v5e
topology: v5e:2x2
jax: 0.10.0
libtpu: 0.0.40
codegen_flags: <defaults>
</compile_context>

<pallas_src>
import functools
import math

import jax
import jax.numpy as jnp
from jax.experimental import pallas as pl
from jax.experimental.pallas import tpu as pltpu


def _round_up(x, m):
    return ((x + m - 1) // m) * m


# ----------------------------------------------------------------------------
# Fused Pallas kernel: all 4 HeteroConv layers (+ ReLUs) in one invocation.
# Stacked node layout: rows [0:n1p) = node_type1 (zero-padded to mult. of 8),
#                      rows [n1p:nt) = node_type2 (zero-padded to mult. of 8).
# ----------------------------------------------------------------------------
def _hetero_gnn_fused_kernel(
    z0_ref,        # (nt, d1+d2)   stacked layer-1 features, block-diag columns
    g0_ref,        # (1, 1)        initial global feature
    adj_ref,       # (nt, nt)      block-anti-diagonal dense adjacency
    w1cat_ref,     # (d1+d2, 2*O)  [vstack(wn1,wn2) | vstack(we1,we2)] of conv1
    wg1_ref,       # (1, O)        conv1 global weight
    wcat_ref,      # (3, O, 4*O)   conv2..4 [wn1 | wn2 | we1 | we2]
    wg_ref,        # (3, O, O)     conv2..4 global weights
    b_ref,         # (4, 5, 1, O)  per-layer biases [bn1, bn2, be1, be2, bg]
    out_nodes_ref,  # (nt, O)
    out_g_ref,      # (1, O)
    *, n1p: int, out_dim: int,
):
    f32 = jnp.float32
    nt = adj_ref.shape[0]
    o = out_dim

    adj = adj_ref[...]

    # Static row-type masks (hoisted once; reused by every layer).
    row = jax.lax.broadcasted_iota(jnp.int32, (nt, 1), 0)
    m1 = (row < n1p).astype(f32)     # node_type1 rows
    m2 = 1.0 - m1                    # node_type2 rows

    # ---------------- layer 1 (conv1) ------------------------------------
    # One stacked matmul covers both the self transform and the edge messages
    # (z0's columns are block-diagonal per node type, so no masking needed).
    r = jnp.dot(z0_ref[...], w1cat_ref[...], preferred_element_type=f32)
    h = r[:, :o] + (m1 * b_ref[0, 0] + m2 * b_ref[0, 1])
    msg = r[:, o:2 * o] + (m1 * b_ref[0, 2] + m2 * b_ref[0, 3])
    agg = jnp.dot(adj, msg, preferred_element_type=f32)
    # global term: (1,1) x (1,O) -> VPU multiply, no K=1 MXU push
    gl = g0_ref[...] * wg1_ref[...] + b_ref[0, 4]
    out = jnp.maximum(h + agg + gl, 0.0)
    gl = jnp.maximum(gl, 0.0)

    # ---------------- layers 2..4 (conv2..conv4) --------------------------
    for li in range(3):
        # ONE lane-dense (nt, O) @ (O, 4O) matmul replaces 4 small matmuls;
        # per-row node-type selection is a cheap VPU mask-mix afterwards.
        r = jnp.dot(out, wcat_ref[li], preferred_element_type=f32)   # (nt, 4O)
        h = (m1 * (r[:, :o] + b_ref[li + 1, 0])
             + m2 * (r[:, o:2 * o] + b_ref[li + 1, 1]))
        msg = (m1 * (r[:, 2 * o:3 * o] + b_ref[li + 1, 2])
               + m2 * (r[:, 3 * o:4 * o] + b_ref[li + 1, 3]))
        agg = jnp.dot(adj, msg, preferred_element_type=f32)
        gl = jnp.dot(gl, wg_ref[li], preferred_element_type=f32) + b_ref[li + 1, 4]
        out = h + agg + gl
        if li < 2:  # ReLU after conv2, conv3; not after conv4
            out = jnp.maximum(out, 0.0)
            gl = jnp.maximum(gl, 0.0)

    out_nodes_ref[...] = out
    out_g_ref[...] = gl


def hetero_gnn_fused_call(z0, g0, adj, packed, *, n1p, out_dim):
    """One pallas_call running the entire 4-layer HeteroGNN forward."""
    w1cat, wg1, wcat, wg, ball = packed
    nt = adj.shape[0]
    k0 = z0.shape[1]
    o = out_dim
    inputs = (z0, g0, adj, w1cat, wg1, wcat, wg, ball)

    # Advisory cost estimate so XLA schedules the fused call sensibly.
    flops = 2 * nt * k0 * (2 * o) + 2 * nt * nt * o            # layer 1
    flops += 3 * (2 * nt * o * (4 * o) + 2 * nt * nt * o + 2 * o * o)  # layers 2..4
    bytes_accessed = sum(int(a.size) * a.dtype.itemsize for a in inputs)
    bytes_accessed += (nt + 1) * o * 4

    vmem = pl.BlockSpec(memory_space=pltpu.MemorySpace.VMEM)
    out_nodes, out_g = pl.pallas_call(
        functools.partial(_hetero_gnn_fused_kernel, n1p=n1p, out_dim=out_dim),
        out_shape=(
            jax.ShapeDtypeStruct((nt, o), jnp.float32),
            jax.ShapeDtypeStruct((1, o), jnp.float32),
        ),
        in_specs=[vmem] * len(inputs),
        out_specs=(vmem, vmem),
        cost_estimate=pl.CostEstimate(
            flops=int(flops), transcendentals=0, bytes_accessed=int(bytes_accessed)),
    )(*inputs)
    return out_nodes, out_g


# ----------------------------------------------------------------------------
# Parameter construction (deterministic, PyTorch-Linear-style shapes)
# ----------------------------------------------------------------------------
def _init_linear(key, in_dim, out_dim):
    kw, kb = jax.random.split(key)
    bound = 1.0 / math.sqrt(in_dim)
    # stored already transposed to (in, out): y = x @ W + b
    w = jax.random.uniform(kw, (in_dim, out_dim), jnp.float32, -bound, bound)
    b = jax.random.uniform(kb, (1, out_dim), jnp.float32, -bound, bound)
    return w, b


def init_hetero_gnn(key, node_input_dim, out_dim):
    """Mirror HeteroGNN.__init__: 4 HeteroConv layers, 5 Linears each."""
    d1 = node_input_dim["node_type1"]
    d2 = node_input_dim["node_type2"]
    layer_in_dims = [
        dict(n1=d1, n2=d2, e1=d1, e2=d2, g=1),
        dict(n1=out_dim, n2=out_dim, e1=out_dim, e2=out_dim, g=out_dim),
        dict(n1=out_dim, n2=out_dim, e1=out_dim, e2=out_dim, g=out_dim),
        dict(n1=out_dim, n2=out_dim, e1=out_dim, e2=out_dim, g=out_dim),
    ]
    layers = []
    for dims in layer_in_dims:
        key, k1, k2, k3, k4, k5 = jax.random.split(key, 6)
        wn1, bn1 = _init_linear(k1, dims["n1"], out_dim)
        wn2, bn2 = _init_linear(k2, dims["n2"], out_dim)
        we1, be1 = _init_linear(k3, dims["e1"], out_dim)
        we2, be2 = _init_linear(k4, dims["e2"], out_dim)
        wg, bg = _init_linear(k5, dims["g"], out_dim)
        layers.append(dict(wn1=wn1, bn1=bn1, wn2=wn2, bn2=bn2,
                           we1=we1, be1=be1, we2=we2, be2=be2,
                           wg=wg, bg=bg))
    return layers


def _pack_params(params_layers):
    """Pack per-layer weights for the fused kernel (N-concatenated operands)."""
    l1 = params_layers[0]
    wself1 = jnp.concatenate([l1["wn1"], l1["wn2"]], axis=0)     # (d1+d2, O)
    wedge1 = jnp.concatenate([l1["we1"], l1["we2"]], axis=0)     # (d1+d2, O)
    w1cat = jnp.concatenate([wself1, wedge1], axis=1)            # (d1+d2, 2O)
    wg1 = l1["wg"]                                               # (1, O)
    wcat = jnp.stack(
        [jnp.concatenate([p["wn1"], p["wn2"], p["we1"], p["we2"]], axis=1)
         for p in params_layers[1:]], axis=0)                    # (3, O, 4O)
    wg = jnp.stack([p["wg"] for p in params_layers[1:]], axis=0)  # (3, O, O)
    ball = jnp.stack(
        [jnp.stack([p["bn1"], p["bn2"], p["be1"], p["be2"], p["bg"]], axis=0)
         for p in params_layers], axis=0)                        # (4, 5, 1, O)
    return w1cat, wg1, wcat, wg, ball


# ----------------------------------------------------------------------------
# Forward pass: conv1 -> relu -> conv2 -> relu -> conv3 -> relu -> conv4
# ----------------------------------------------------------------------------
def hetero_gnn_forward(params_layers, x, edge_index, edge_types, n1, n2):
    x1, x2, g = x["node_type1"], x["node_type2"], x["global"]
    d1, d2 = x1.shape[1], x2.shape[1]
    out_dim = params_layers[0]["wn1"].shape[1]

    # 8-sublane-aligned stacked node layout (padding rows are inert).
    n1p, n2p = _round_up(n1, 8), _round_up(n2, 8)
    nt = n1p + n2p

    # Layer-1 input: block-diagonal feature columns [x1 | x2].
    z0 = jnp.zeros((nt, d1 + d2), jnp.float32)
    z0 = z0.at[:n1, :d1].set(x1)
    z0 = z0.at[n1p:n1p + n2, d1:].set(x2)

    # Dense block-anti-diagonal adjacency (built once; edges static per call).
    src, dst = edge_index[0], edge_index[1]
    w0 = (edge_types == 0).astype(jnp.float32)   # edge_type1: type1 -> type2
    w1 = (edge_types == 1).astype(jnp.float32)   # edge_type2: type2 -> type1
    adj = jnp.zeros((nt, nt), jnp.float32)
    adj = adj.at[n1p + jnp.clip(dst, 0, n2 - 1), jnp.clip(src, 0, n1 - 1)].add(w0)
    adj = adj.at[jnp.clip(dst, 0, n1 - 1), n1p + jnp.clip(src, 0, n2 - 1)].add(w1)

    packed = _pack_params(params_layers)
    out_nodes, out_g = hetero_gnn_fused_call(z0, g, adj, packed,
                                             n1p=n1p, out_dim=out_dim)
    return {
        "node_type1": out_nodes[:n1],
        "node_type2": out_nodes[n1p:n1p + n2],
        "global": out_g,
    }


# ----------------------------------------------------------------------------
# Pure-JAX reference (mirrors the per-layer math) for a correctness check.
# ----------------------------------------------------------------------------
def hetero_gnn_reference(params_layers, x, edge_index, edge_types, n1, n2):
    hi = jax.lax.Precision.HIGHEST
    x1, x2, g = x["node_type1"], x["node_type2"], x["global"]
    src, dst = edge_index[0], edge_index[1]
    w0 = (edge_types == 0).astype(jnp.float32)
    w1 = (edge_types == 1).astype(jnp.float32)
    a_e1 = jnp.zeros((n2, n1), jnp.float32).at[
        jnp.clip(dst, 0, n2 - 1), jnp.clip(src, 0, n1 - 1)].add(w0)
    a_e2 = jnp.zeros((n1, n2), jnp.float32).at[
        jnp.clip(dst, 0, n1 - 1), jnp.clip(src, 0, n2 - 1)].add(w1)
    for li, p in enumerate(params_layers):
        gl = jnp.dot(g, p["wg"], precision=hi) + p["bg"]
        h1 = jnp.dot(x1, p["wn1"], precision=hi) + p["bn1"]
        h2 = jnp.dot(x2, p["wn2"], precision=hi) + p["bn2"]
        m1 = jnp.dot(x1, p["we1"], precision=hi) + p["be1"]
        m2 = jnp.dot(x2, p["we2"], precision=hi) + p["be2"]
        o1 = h1 + jnp.dot(a_e2, m2, precision=hi) + gl
        o2 = h2 + jnp.dot(a_e1, m1, precision=hi) + gl
        og = gl
        if li < 3:
            o1, o2, og = jnp.maximum(o1, 0.0), jnp.maximum(o2, 0.0), jnp.maximum(og, 0.0)
        x1, x2, g = o1, o2, og
    return {"node_type1": x1, "node_type2": x2, "global": g}


# ----------------------------------------------------------------------------
if __name__ == "__main__":
    key = jax.random.PRNGKey(0)

    N1, N2 = 16, 12          # nodes of type1 / type2
    D1, D2 = 8, 6            # node_input_dim per type
    OUT = 32                 # out_dim
    E = 20                   # number of edges

    node_input_dim = {"node_type1": D1, "node_type2": D2}
    key, kp, kx1, kx2, ke1, ke2, ke3, ke4, ket = jax.random.split(key, 9)

    params_layers = init_hetero_gnn(kp, node_input_dim, OUT)

    x = {
        "node_type1": jax.random.normal(kx1, (N1, D1), jnp.float32),
        "node_type2": jax.random.normal(kx2, (N2, D2), jnp.float32),
        "global": jnp.ones((1, 1), jnp.float32),
    }

    # edge_types: 0 = edge_type1 (type1->type2), 1 = edge_type2 (type2->type1)
    edge_types = jax.random.randint(ket, (E,), 0, 2)
    src0 = jax.random.randint(ke1, (E,), 0, N1)
    dst0 = jax.random.randint(ke2, (E,), 0, N2)
    src1 = jax.random.randint(ke3, (E,), 0, N2)
    dst1 = jax.random.randint(ke4, (E,), 0, N1)
    src = jnp.where(edge_types == 0, src0, src1)
    dst = jnp.where(edge_types == 0, dst0, dst1)
    edge_index = jnp.stack([src, dst], axis=0)  # [2, E]

    fwd = jax.jit(functools.partial(hetero_gnn_forward, n1=N1, n2=N2))
    out = fwd(params_layers, x, edge_index, edge_types)
    jax.block_until_ready(out)

    # Correctness check against the pure-JAX reference.
    ref = hetero_gnn_reference(params_layers, x, edge_index, edge_types, N1, N2)
    for k in ("node_type1", "node_type2", "global"):
        assert out[k].shape == ref[k].shape, k
        assert jnp.allclose(out[k], ref[k], atol=1e-2, rtol=1e-2), k

    assert out["node_type1"].shape == (N1, OUT)
    assert out["node_type2"].shape == (N2, OUT)
    assert out["global"].shape == (1, OUT)
    print("KERNEL_OK")
</pallas_src>

<mosaic_0001>
module attributes {stable_mosaic.version = 11 : i64} {
  func.func @_hetero_gnn_fused_kernel(%arg0: memref<32x14xf32, #tpu.memory_space<vmem>>, %arg1: memref<1x1xf32, #tpu.memory_space<vmem>>, %arg2: memref<32x32xf32, #tpu.memory_space<vmem>>, %arg3: memref<14x64xf32, #tpu.memory_space<vmem>>, %arg4: memref<1x32xf32, #tpu.memory_space<vmem>>, %arg5: memref<3x32x128xf32, #tpu.memory_space<vmem>>, %arg6: memref<3x32x32xf32, #tpu.memory_space<vmem>>, %arg7: memref<4x5x1x32xf32, #tpu.memory_space<vmem>>, %arg8: memref<32x32xf32, #tpu.memory_space<vmem>>, %arg9: memref<1x32xf32, #tpu.memory_space<vmem>>) attributes {dimension_semantics = [], scalar_prefetch = 0 : i64, scratch_operands = 0 : i64, tpu.core_type = #tpu.core_type<tc>} {
    %c0 = arith.constant 0 : index
    %c0_0 = arith.constant 0 : index
    %0 = vector.load %arg2[%c0, %c0_0] : memref<32x32xf32, #tpu.memory_space<vmem>>, vector<32x32xf32>
    %1 = tpu.iota {dimensions = array<i32: 0>} : vector<32x1xi32>
    %c16_i32 = arith.constant 16 : i32
    %2 = vector.broadcast %c16_i32 : i32 to vector<32x1xi32>
    %3 = arith.cmpi slt, %1, %2 : vector<32x1xi32>
    %4 = arith.extui %3 : vector<32x1xi1> to vector<32x1xi32>
    %5 = arith.sitofp %4 : vector<32x1xi32> to vector<32x1xf32>
    %cst = arith.constant 1.000000e+00 : f32
    %6 = vector.broadcast %cst : f32 to vector<32x1xf32>
    %7 = arith.subf %6, %5 : vector<32x1xf32>
    %c0_1 = arith.constant 0 : index
    %c0_2 = arith.constant 0 : index
    %8 = vector.load %arg0[%c0_1, %c0_2] : memref<32x14xf32, #tpu.memory_space<vmem>>, vector<32x14xf32>
    %c0_3 = arith.constant 0 : index
    %c0_4 = arith.constant 0 : index
    %9 = vector.load %arg3[%c0_3, %c0_4] : memref<14x64xf32, #tpu.memory_space<vmem>>, vector<14x64xf32>
    %cst_5 = arith.constant dense<0.000000e+00> : vector<32x64xf32>
    %10 = tpu.matmul %8, %9, %cst_5 {dimension_numbers = #tpu.dot_dimension_numbers<[1], [0], [0], [1], [0, 0, 1, 1], [], []>} : vector<32x14xf32>, vector<14x64xf32>, vector<32x64xf32> -> vector<32x64xf32>
    %11 = vector.extract_strided_slice %10 {offsets = [0, 0], sizes = [32, 32], strides = [1, 1]} : vector<32x64xf32> to vector<32x32xf32>
    %c0_6 = arith.constant 0 : index
    %c0_7 = arith.constant 0 : index
    %c0_8 = arith.constant 0 : index
    %c0_9 = arith.constant 0 : index
    %12 = vector.load %arg7[%c0_6, %c0_7, %c0_8, %c0_9] : memref<4x5x1x32xf32, #tpu.memory_space<vmem>>, vector<1x1x1x32xf32>
    %13 = vector.shape_cast %12 : vector<1x1x1x32xf32> to vector<1x32xf32>
    %14 = vector.broadcast %5 : vector<32x1xf32> to vector<32x32xf32>
    %15 = vector.broadcast %13 : vector<1x32xf32> to vector<32x32xf32>
    %16 = arith.mulf %14, %15 : vector<32x32xf32>
    %c0_10 = arith.constant 0 : index
    %c1 = arith.constant 1 : index
    %c0_11 = arith.constant 0 : index
    %c0_12 = arith.constant 0 : index
    %17 = vector.load %arg7[%c0_10, %c1, %c0_11, %c0_12] : memref<4x5x1x32xf32, #tpu.memory_space<vmem>>, vector<1x1x1x32xf32>
    %18 = vector.shape_cast %17 : vector<1x1x1x32xf32> to vector<1x32xf32>
    %19 = vector.broadcast %7 : vector<32x1xf32> to vector<32x32xf32>
    %20 = vector.broadcast %18 : vector<1x32xf32> to vector<32x32xf32>
    %21 = arith.mulf %19, %20 : vector<32x32xf32>
    %22 = arith.addf %16, %21 : vector<32x32xf32>
    %23 = arith.addf %11, %22 : vector<32x32xf32>
    %24 = vector.extract_strided_slice %10 {offsets = [0, 32], sizes = [32, 32], strides = [1, 1]} : vector<32x64xf32> to vector<32x32xf32>
    %c0_13 = arith.constant 0 : index
    %c2 = arith.constant 2 : index
    %c0_14 = arith.constant 0 : index
    %c0_15 = arith.constant 0 : index
    %25 = vector.load %arg7[%c0_13, %c2, %c0_14, %c0_15] : memref<4x5x1x32xf32, #tpu.memory_space<vmem>>, vector<1x1x1x32xf32>
    %26 = vector.shape_cast %25 : vector<1x1x1x32xf32> to vector<1x32xf32>
    %27 = vector.broadcast %5 : vector<32x1xf32> to vector<32x32xf32>
    %28 = vector.broadcast %26 : vector<1x32xf32> to vector<32x32xf32>
    %29 = arith.mulf %27, %28 : vector<32x32xf32>
    %c0_16 = arith.constant 0 : index
    %c3 = arith.constant 3 : index
    %c0_17 = arith.constant 0 : index
    %c0_18 = arith.constant 0 : index
    %30 = vector.load %arg7[%c0_16, %c3, %c0_17, %c0_18] : memref<4x5x1x32xf32, #tpu.memory_space<vmem>>, vector<1x1x1x32xf32>
    %31 = vector.shape_cast %30 : vector<1x1x1x32xf32> to vector<1x32xf32>
    %32 = vector.broadcast %7 : vector<32x1xf32> to vector<32x32xf32>
    %33 = vector.broadcast %31 : vector<1x32xf32> to vector<32x32xf32>
    %34 = arith.mulf %32, %33 : vector<32x32xf32>
    %35 = arith.addf %29, %34 : vector<32x32xf32>
    %36 = arith.addf %24, %35 : vector<32x32xf32>
    %cst_19 = arith.constant dense<0.000000e+00> : vector<32x32xf32>
    %37 = tpu.matmul %0, %36, %cst_19 {dimension_numbers = #tpu.dot_dimension_numbers<[1], [0], [0], [1], [0, 0, 1, 1], [], []>} : vector<32x32xf32>, vector<32x32xf32>, vector<32x32xf32> -> vector<32x32xf32>
    %c0_20 = arith.constant 0 : index
    %c0_21 = arith.constant 0 : index
    %38 = vector.load %arg1[%c0_20, %c0_21] : memref<1x1xf32, #tpu.memory_space<vmem>>, vector<1x1xf32>
    %c0_22 = arith.constant 0 : index
    %c0_23 = arith.constant 0 : index
    %39 = vector.load %arg4[%c0_22, %c0_23] : memref<1x32xf32, #tpu.memory_space<vmem>>, vector<1x32xf32>
    %40 = vector.broadcast %38 : vector<1x1xf32> to vector<1x32xf32>
    %41 = arith.mulf %40, %39 : vector<1x32xf32>
    %c0_24 = arith.constant 0 : index
    %c4 = arith.constant 4 : index
    %c0_25 = arith.constant 0 : index
    %c0_26 = arith.constant 0 : index
    %42 = vector.load %arg7[%c0_24, %c4, %c0_25, %c0_26] : memref<4x5x1x32xf32, #tpu.memory_space<vmem>>, vector<1x1x1x32xf32>
    %43 = vector.shape_cast %42 : vector<1x1x1x32xf32> to vector<1x32xf32>
    %44 = arith.addf %41, %43 : vector<1x32xf32>
    %45 = arith.addf %23, %37 : vector<32x32xf32>
    %46 = vector.broadcast %44 : vector<1x32xf32> to vector<32x32xf32>
    %47 = arith.addf %45, %46 : vector<32x32xf32>
    %cst_27 = arith.constant 0.000000e+00 : f32
    %48 = vector.broadcast %cst_27 : f32 to vector<32x32xf32>
    %49 = arith.maximumf %47, %48 : vector<32x32xf32>
    %cst_28 = arith.constant 0.000000e+00 : f32
    %50 = vector.broadcast %cst_28 : f32 to vector<1x32xf32>
    %51 = arith.maximumf %44, %50 : vector<1x32xf32>
    %c0_29 = arith.constant 0 : index
    %c0_30 = arith.constant 0 : index
    %c0_31 = arith.constant 0 : index
    %52 = vector.load %arg5[%c0_29, %c0_30, %c0_31] : memref<3x32x128xf32, #tpu.memory_space<vmem>>, vector<1x32x128xf32>
    %53 = vector.shape_cast %52 : vector<1x32x128xf32> to vector<32x128xf32>
    %cst_32 = arith.constant dense<0.000000e+00> : vector<32x128xf32>
    %54 = tpu.matmul %49, %53, %cst_32 {dimension_numbers = #tpu.dot_dimension_numbers<[1], [0], [0], [1], [0, 0, 1, 1], [], []>} : vector<32x32xf32>, vector<32x128xf32>, vector<32x128xf32> -> vector<32x128xf32>
    %55 = vector.extract_strided_slice %54 {offsets = [0, 0], sizes = [32, 32], strides = [1, 1]} : vector<32x128xf32> to vector<32x32xf32>
    %c1_33 = arith.constant 1 : index
    %c0_34 = arith.constant 0 : index
    %c0_35 = arith.constant 0 : index
    %c0_36 = arith.constant 0 : index
    %56 = vector.load %arg7[%c1_33, %c0_34, %c0_35, %c0_36] : memref<4x5x1x32xf32, #tpu.memory_space<vmem>>, vector<1x1x1x32xf32>
    %57 = vector.shape_cast %56 : vector<1x1x1x32xf32> to vector<1x32xf32>
    %58 = vector.broadcast %57 : vector<1x32xf32> to vector<32x32xf32>
    %59 = arith.addf %55, %58 : vector<32x32xf32>
    %60 = vector.broadcast %5 : vector<32x1xf32> to vector<32x32xf32>
    %61 = arith.mulf %60, %59 : vector<32x32xf32>
    %62 = vector.extract_strided_slice %54 {offsets = [0, 32], sizes = [32, 32], strides = [1, 1]} : vector<32x128xf32> to vector<32x32xf32>
    %c1_37 = arith.constant 1 : index
    %c1_38 = arith.constant 1 : index
    %c0_39 = arith.constant 0 : index
    %c0_40 = arith.constant 0 : index
    %63 = vector.load %arg7[%c1_37, %c1_38, %c0_39, %c0_40] : memref<4x5x1x32xf32, #tpu.memory_space<vmem>>, vector<1x1x1x32xf32>
    %64 = vector.shape_cast %63 : vector<1x1x1x32xf32> to vector<1x32xf32>
    %65 = vector.broadcast %64 : vector<1x32xf32> to vector<32x32xf32>
    %66 = arith.addf %62, %65 : vector<32x32xf32>
    %67 = vector.broadcast %7 : vector<32x1xf32> to vector<32x32xf32>
    %68 = arith.mulf %67, %66 : vector<32x32xf32>
    %69 = arith.addf %61, %68 : vector<32x32xf32>
    %70 = vector.extract_strided_slice %54 {offsets = [0, 64], sizes = [32, 32], strides = [1, 1]} : vector<32x128xf32> to vector<32x32xf32>
    %c1_41 = arith.constant 1 : index
    %c2_42 = arith.constant 2 : index
    %c0_43 = arith.constant 0 : index
    %c0_44 = arith.constant 0 : index
    %71 = vector.load %arg7[%c1_41, %c2_42, %c0_43, %c0_44] : memref<4x5x1x32xf32, #tpu.memory_space<vmem>>, vector<1x1x1x32xf32>
    %72 = vector.shape_cast %71 : vector<1x1x1x32xf32> to vector<1x32xf32>
    %73 = vector.broadcast %72 : vector<1x32xf32> to vector<32x32xf32>
    %74 = arith.addf %70, %73 : vector<32x32xf32>
    %75 = vector.broadcast %5 : vector<32x1xf32> to vector<32x32xf32>
    %76 = arith.mulf %75, %74 : vector<32x32xf32>
    %77 = vector.extract_strided_slice %54 {offsets = [0, 96], sizes = [32, 32], strides = [1, 1]} : vector<32x128xf32> to vector<32x32xf32>
    %c1_45 = arith.constant 1 : index
    %c3_46 = arith.constant 3 : index
    %c0_47 = arith.constant 0 : index
    %c0_48 = arith.constant 0 : index
    %78 = vector.load %arg7[%c1_45, %c3_46, %c0_47, %c0_48] : memref<4x5x1x32xf32, #tpu.memory_space<vmem>>, vector<1x1x1x32xf32>
    %79 = vector.shape_cast %78 : vector<1x1x1x32xf32> to vector<1x32xf32>
    %80 = vector.broadcast %79 : vector<1x32xf32> to vector<32x32xf32>
    %81 = arith.addf %77, %80 : vector<32x32xf32>
    %82 = vector.broadcast %7 : vector<32x1xf32> to vector<32x32xf32>
    %83 = arith.mulf %82, %81 : vector<32x32xf32>
    %84 = arith.addf %76, %83 : vector<32x32xf32>
    %cst_49 = arith.constant dense<0.000000e+00> : vector<32x32xf32>
    %85 = tpu.matmul %0, %84, %cst_49 {dimension_numbers = #tpu.dot_dimension_numbers<[1], [0], [0], [1], [0, 0, 1, 1], [], []>} : vector<32x32xf32>, vector<32x32xf32>, vector<32x32xf32> -> vector<32x32xf32>
    %c0_50 = arith.constant 0 : index
    %c0_51 = arith.constant 0 : index
    %c0_52 = arith.constant 0 : index
    %86 = vector.load %arg6[%c0_50, %c0_51, %c0_52] : memref<3x32x32xf32, #tpu.memory_space<vmem>>, vector<1x32x32xf32>
    %87 = vector.shape_cast %86 : vector<1x32x32xf32> to vector<32x32xf32>
    %cst_53 = arith.constant dense<0.000000e+00> : vector<1x32xf32>
    %88 = tpu.matmul %51, %87, %cst_53 {dimension_numbers = #tpu.dot_dimension_numbers<[1], [0], [0], [1], [0, 0, 1, 1], [], []>} : vector<1x32xf32>, vector<32x32xf32>, vector<1x32xf32> -> vector<1x32xf32>
    %c1_54 = arith.constant 1 : index
    %c4_55 = arith.constant 4 : index
    %c0_56 = arith.constant 0 : index
    %c0_57 = arith.constant 0 : index
    %89 = vector.load %arg7[%c1_54, %c4_55, %c0_56, %c0_57] : memref<4x5x1x32xf32, #tpu.memory_space<vmem>>, vector<1x1x1x32xf32>
    %90 = vector.shape_cast %89 : vector<1x1x1x32xf32> to vector<1x32xf32>
    %91 = arith.addf %88, %90 : vector<1x32xf32>
    %92 = arith.addf %69, %85 : vector<32x32xf32>
    %93 = vector.broadcast %91 : vector<1x32xf32> to vector<32x32xf32>
    %94 = arith.addf %92, %93 : vector<32x32xf32>
    %cst_58 = arith.constant 0.000000e+00 : f32
    %95 = vector.broadcast %cst_58 : f32 to vector<32x32xf32>
    %96 = arith.maximumf %94, %95 : vector<32x32xf32>
    %cst_59 = arith.constant 0.000000e+00 : f32
    %97 = vector.broadcast %cst_59 : f32 to vector<1x32xf32>
    %98 = arith.maximumf %91, %97 : vector<1x32xf32>
    %c1_60 = arith.constant 1 : index
    %c0_61 = arith.constant 0 : index
    %c0_62 = arith.constant 0 : index
    %99 = vector.load %arg5[%c1_60, %c0_61, %c0_62] : memref<3x32x128xf32, #tpu.memory_space<vmem>>, vector<1x32x128xf32>
    %100 = vector.shape_cast %99 : vector<1x32x128xf32> to vector<32x128xf32>
    %cst_63 = arith.constant dense<0.000000e+00> : vector<32x128xf32>
    %101 = tpu.matmul %96, %100, %cst_63 {dimension_numbers = #tpu.dot_dimension_numbers<[1], [0], [0], [1], [0, 0, 1, 1], [], []>} : vector<32x32xf32>, vector<32x128xf32>, vector<32x128xf32> -> vector<32x128xf32>
    %102 = vector.extract_strided_slice %101 {offsets = [0, 0], sizes = [32, 32], strides = [1, 1]} : vector<32x128xf32> to vector<32x32xf32>
    %c2_64 = arith.constant 2 : index
    %c0_65 = arith.constant 0 : index
    %c0_66 = arith.constant 0 : index
    %c0_67 = arith.constant 0 : index
    %103 = vector.load %arg7[%c2_64, %c0_65, %c0_66, %c0_67] : memref<4x5x1x32xf32, #tpu.memory_space<vmem>>, vector<1x1x1x32xf32>
    %104 = vector.shape_cast %103 : vector<1x1x1x32xf32> to vector<1x32xf32>
    %105 = vector.broadcast %104 : vector<1x32xf32> to vector<32x32xf32>
    %106 = arith.addf %102, %105 : vector<32x32xf32>
    %107 = vector.broadcast %5 : vector<32x1xf32> to vector<32x32xf32>
    %108 = arith.mulf %107, %106 : vector<32x32xf32>
    %109 = vector.extract_strided_slice %101 {offsets = [0, 32], sizes = [32, 32], strides = [1, 1]} : vector<32x128xf32> to vector<32x32xf32>
    %c2_68 = arith.constant 2 : index
    %c1_69 = arith.constant 1 : index
    %c0_70 = arith.constant 0 : index
    %c0_71 = arith.constant 0 : index
    %110 = vector.load %arg7[%c2_68, %c1_69, %c0_70, %c0_71] : memref<4x5x1x32xf32, #tpu.memory_space<vmem>>, vector<1x1x1x32xf32>
    %111 = vector.shape_cast %110 : vector<1x1x1x32xf32> to vector<1x32xf32>
    %112 = vector.broadcast %111 : vector<1x32xf32> to vector<32x32xf32>
    %113 = arith.addf %109, %112 : vector<32x32xf32>
    %114 = vector.broadcast %7 : vector<32x1xf32> to vector<32x32xf32>
    %115 = arith.mulf %114, %113 : vector<32x32xf32>
    %116 = arith.addf %108, %115 : vector<32x32xf32>
    %117 = vector.extract_strided_slice %101 {offsets = [0, 64], sizes = [32, 32], strides = [1, 1]} : vector<32x128xf32> to vector<32x32xf32>
    %c2_72 = arith.constant 2 : index
    %c2_73 = arith.constant 2 : index
    %c0_74 = arith.constant 0 : index
    %c0_75 = arith.constant 0 : index
    %118 = vector.load %arg7[%c2_72, %c2_73, %c0_74, %c0_75] : memref<4x5x1x32xf32, #tpu.memory_space<vmem>>, vector<1x1x1x32xf32>
    %119 = vector.shape_cast %118 : vector<1x1x1x32xf32> to vector<1x32xf32>
    %120 = vector.broadcast %119 : vector<1x32xf32> to vector<32x32xf32>
    %121 = arith.addf %117, %120 : vector<32x32xf32>
    %122 = vector.broadcast %5 : vector<32x1xf32> to vector<32x32xf32>
    %123 = arith.mulf %122, %121 : vector<32x32xf32>
    %124 = vector.extract_strided_slice %101 {offsets = [0, 96], sizes = [32, 32], strides = [1, 1]} : vector<32x128xf32> to vector<32x32xf32>
    %c2_76 = arith.constant 2 : index
    %c3_77 = arith.constant 3 : index
    %c0_78 = arith.constant 0 : index
    %c0_79 = arith.constant 0 : index
    %125 = vector.load %arg7[%c2_76, %c3_77, %c0_78, %c0_79] : memref<4x5x1x32xf32, #tpu.memory_space<vmem>>, vector<1x1x1x32xf32>
    %126 = vector.shape_cast %125 : vector<1x1x1x32xf32> to vector<1x32xf32>
    %127 = vector.broadcast %126 : vector<1x32xf32> to vector<32x32xf32>
    %128 = arith.addf %124, %127 : vector<32x32xf32>
    %129 = vector.broadcast %7 : vector<32x1xf32> to vector<32x32xf32>
    %130 = arith.mulf %129, %128 : vector<32x32xf32>
    %131 = arith.addf %123, %130 : vector<32x32xf32>
    %cst_80 = arith.constant dense<0.000000e+00> : vector<32x32xf32>
    %132 = tpu.matmul %0, %131, %cst_80 {dimension_numbers = #tpu.dot_dimension_numbers<[1], [0], [0], [1], [0, 0, 1, 1], [], []>} : vector<32x32xf32>, vector<32x32xf32>, vector<32x32xf32> -> vector<32x32xf32>
    %c1_81 = arith.constant 1 : index
    %c0_82 = arith.constant 0 : index
    %c0_83 = arith.constant 0 : index
    %133 = vector.load %arg6[%c1_81, %c0_82, %c0_83] : memref<3x32x32xf32, #tpu.memory_space<vmem>>, vector<1x32x32xf32>
    %134 = vector.shape_cast %133 : vector<1x32x32xf32> to vector<32x32xf32>
    %cst_84 = arith.constant dense<0.000000e+00> : vector<1x32xf32>
    %135 = tpu.matmul %98, %134, %cst_84 {dimension_numbers = #tpu.dot_dimension_numbers<[1], [0], [0], [1], [0, 0, 1, 1], [], []>} : vector<1x32xf32>, vector<32x32xf32>, vector<1x32xf32> -> vector<1x32xf32>
    %c2_85 = arith.constant 2 : index
    %c4_86 = arith.constant 4 : index
    %c0_87 = arith.constant 0 : index
    %c0_88 = arith.constant 0 : index
    %136 = vector.load %arg7[%c2_85, %c4_86, %c0_87, %c0_88] : memref<4x5x1x32xf32, #tpu.memory_space<vmem>>, vector<1x1x1x32xf32>
    %137 = vector.shape_cast %136 : vector<1x1x1x32xf32> to vector<1x32xf32>
    %138 = arith.addf %135, %137 : vector<1x32xf32>
    %139 = arith.addf %116, %132 : vector<32x32xf32>
    %140 = vector.broadcast %138 : vector<1x32xf32> to vector<32x32xf32>
    %141 = arith.addf %139, %140 : vector<32x32xf32>
    %cst_89 = arith.constant 0.000000e+00 : f32
    %142 = vector.broadcast %cst_89 : f32 to vector<32x32xf32>
    %143 = arith.maximumf %141, %142 : vector<32x32xf32>
    %cst_90 = arith.constant 0.000000e+00 : f32
    %144 = vector.broadcast %cst_90 : f32 to vector<1x32xf32>
    %145 = arith.maximumf %138, %144 : vector<1x32xf32>
    %c2_91 = arith.constant 2 : index
    %c0_92 = arith.constant 0 : index
    %c0_93 = arith.constant 0 : index
    %146 = vector.load %arg5[%c2_91, %c0_92, %c0_93] : memref<3x32x128xf32, #tpu.memory_space<vmem>>, vector<1x32x128xf32>
    %147 = vector.shape_cast %146 : vector<1x32x128xf32> to vector<32x128xf32>
    %cst_94 = arith.constant dense<0.000000e+00> : vector<32x128xf32>
    %148 = tpu.matmul %143, %147, %cst_94 {dimension_numbers = #tpu.dot_dimension_numbers<[1], [0], [0], [1], [0, 0, 1, 1], [], []>} : vector<32x32xf32>, vector<32x128xf32>, vector<32x128xf32> -> vector<32x128xf32>
    %149 = vector.extract_strided_slice %148 {offsets = [0, 0], sizes = [32, 32], strides = [1, 1]} : vector<32x128xf32> to vector<32x32xf32>
    %c3_95 = arith.constant 3 : index
    %c0_96 = arith.constant 0 : index
    %c0_97 = arith.constant 0 : index
    %c0_98 = arith.constant 0 : index
    %150 = vector.load %arg7[%c3_95, %c0_96, %c0_97, %c0_98] : memref<4x5x1x32xf32, #tpu.memory_space<vmem>>, vector<1x1x1x32xf32>
    %151 = vector.shape_cast %150 : vector<1x1x1x32xf32> to vector<1x32xf32>
    %152 = vector.broadcast %151 : vector<1x32xf32> to vector<32x32xf32>
    %153 = arith.addf %149, %152 : vector<32x32xf32>
    %154 = vector.broadcast %5 : vector<32x1xf32> to vector<32x32xf32>
    %155 = arith.mulf %154, %153 : vector<32x32xf32>
    %156 = vector.extract_strided_slice %148 {offsets = [0, 32], sizes = [32, 32], strides = [1, 1]} : vector<32x128xf32> to vector<32x32xf32>
    %c3_99 = arith.constant 3 : index
    %c1_100 = arith.constant 1 : index
    %c0_101 = arith.constant 0 : index
    %c0_102 = arith.constant 0 : index
    %157 = vector.load %arg7[%c3_99, %c1_100, %c0_101, %c0_102] : memref<4x5x1x32xf32, #tpu.memory_space<vmem>>, vector<1x1x1x32xf32>
    %158 = vector.shape_cast %157 : vector<1x1x1x32xf32> to vector<1x32xf32>
    %159 = vector.broadcast %158 : vector<1x32xf32> to vector<32x32xf32>
    %160 = arith.addf %156, %159 : vector<32x32xf32>
    %161 = vector.broadcast %7 : vector<32x1xf32> to vector<32x32xf32>
    %162 = arith.mulf %161, %160 : vector<32x32xf32>
    %163 = arith.addf %155, %162 : vector<32x32xf32>
    %164 = vector.extract_strided_slice %148 {offsets = [0, 64], sizes = [32, 32], strides = [1, 1]} : vector<32x128xf32> to vector<32x32xf32>
    %c3_103 = arith.constant 3 : index
    %c2_104 = arith.constant 2 : index
    %c0_105 = arith.constant 0 : index
    %c0_106 = arith.constant 0 : index
    %165 = vector.load %arg7[%c3_103, %c2_104, %c0_105, %c0_106] : memref<4x5x1x32xf32, #tpu.memory_space<vmem>>, vector<1x1x1x32xf32>
    %166 = vector.shape_cast %165 : vector<1x1x1x32xf32> to vector<1x32xf32>
    %167 = vector.broadcast %166 : vector<1x32xf32> to vector<32x32xf32>
    %168 = arith.addf %164, %167 : vector<32x32xf32>
    %169 = vector.broadcast %5 : vector<32x1xf32> to vector<32x32xf32>
    %170 = arith.mulf %169, %168 : vector<32x32xf32>
    %171 = vector.extract_strided_slice %148 {offsets = [0, 96], sizes = [32, 32], strides = [1, 1]} : vector<32x128xf32> to vector<32x32xf32>
    %c3_107 = arith.constant 3 : index
    %c3_108 = arith.constant 3 : index
    %c0_109 = arith.constant 0 : index
    %c0_110 = arith.constant 0 : index
    %172 = vector.load %arg7[%c3_107, %c3_108, %c0_109, %c0_110] : memref<4x5x1x32xf32, #tpu.memory_space<vmem>>, vector<1x1x1x32xf32>
    %173 = vector.shape_cast %172 : vector<1x1x1x32xf32> to vector<1x32xf32>
    %174 = vector.broadcast %173 : vector<1x32xf32> to vector<32x32xf32>
    %175 = arith.addf %171, %174 : vector<32x32xf32>
    %176 = vector.broadcast %7 : vector<32x1xf32> to vector<32x32xf32>
    %177 = arith.mulf %176, %175 : vector<32x32xf32>
    %178 = arith.addf %170, %177 : vector<32x32xf32>
    %cst_111 = arith.constant dense<0.000000e+00> : vector<32x32xf32>
    %179 = tpu.matmul %0, %178, %cst_111 {dimension_numbers = #tpu.dot_dimension_numbers<[1], [0], [0], [1], [0, 0, 1, 1], [], []>} : vector<32x32xf32>, vector<32x32xf32>, vector<32x32xf32> -> vector<32x32xf32>
    %c2_112 = arith.constant 2 : index
    %c0_113 = arith.constant 0 : index
    %c0_114 = arith.constant 0 : index
    %180 = vector.load %arg6[%c2_112, %c0_113, %c0_114] : memref<3x32x32xf32, #tpu.memory_space<vmem>>, vector<1x32x32xf32>
    %181 = vector.shape_cast %180 : vector<1x32x32xf32> to vector<32x32xf32>
    %cst_115 = arith.constant dense<0.000000e+00> : vector<1x32xf32>
    %182 = tpu.matmul %145, %181, %cst_115 {dimension_numbers = #tpu.dot_dimension_numbers<[1], [0], [0], [1], [0, 0, 1, 1], [], []>} : vector<1x32xf32>, vector<32x32xf32>, vector<1x32xf32> -> vector<1x32xf32>
    %c3_116 = arith.constant 3 : index
    %c4_117 = arith.constant 4 : index
    %c0_118 = arith.constant 0 : index
    %c0_119 = arith.constant 0 : index
    %183 = vector.load %arg7[%c3_116, %c4_117, %c0_118, %c0_119] : memref<4x5x1x32xf32, #tpu.memory_space<vmem>>, vector<1x1x1x32xf32>
    %184 = vector.shape_cast %183 : vector<1x1x1x32xf32> to vector<1x32xf32>
    %185 = arith.addf %182, %184 : vector<1x32xf32>
    %186 = arith.addf %163, %179 : vector<32x32xf32>
    %187 = vector.broadcast %185 : vector<1x32xf32> to vector<32x32xf32>
    %188 = arith.addf %186, %187 : vector<32x32xf32>
    %c0_120 = arith.constant 0 : index
    %c0_121 = arith.constant 0 : index
    %189 = vector.load %arg8[%c0_120, %c0_121] : memref<32x32xf32, #tpu.memory_space<vmem>>, vector<32x32xf32>
    tpu.vector_store %arg8[%c0_120, %c0_121], %188 {strides = array<i32>} : memref<32x32xf32, #tpu.memory_space<vmem>>, vector<32x32xf32>,
    %c0_122 = arith.constant 0 : index
    %c0_123 = arith.constant 0 : index
    %190 = vector.load %arg9[%c0_122, %c0_123] : memref<1x32xf32, #tpu.memory_space<vmem>>, vector<1x32xf32>
    tpu.vector_store %arg9[%c0_122, %c0_123], %185 {strides = array<i32>} : memref<1x32xf32, #tpu.memory_space<vmem>>, vector<1x32xf32>,
    return
  }
}

</mosaic_0001>

<llo_original>
// kernel: hetero_gnn_forward.1
$region0: #{hetero_gnn_forward.1}
  #allocation0 [shape = 'u32[]', space=smem, size = 0x4, offset = 0x4, fixed_abs, tag = 'smem constant byte address 0x4 - core index']
  #allocation1 [shape = 'u32[72,128]{1,0:T(1,128)}', space=vmem, size = 0x9000, scoped, tag = 'internal scratch']
  #allocation2 [shape = 'f32[1,1]{1,0:T(1,128)S(1)}', space=vmem, size = 0x200, scoped, tag = 'scoped memory for hetero_gnn_forward.1']
  %s0 = inlined_call_operand.vmem [shape: f32[32,14], index: 0, kind: input, shape index: {}]
  %s1 = inlined_call_operand.<no memory space> [shape: f32[1,1], index: 1, kind: input, shape index: {}]
  %s2 = inlined_call_operand.vmem [shape: f32[32,32], index: 2, kind: input, shape index: {}]
  %s3 = inlined_call_operand.vmem [shape: f32[14,64], index: 3, kind: input, shape index: {}]
  %s4 = inlined_call_operand.vmem [shape: f32[1,32], index: 4, kind: input, shape index: {}]
  %s5 = inlined_call_operand.vmem [shape: f32[3,32,128], index: 5, kind: input, shape index: {}]
  %s6 = inlined_call_operand.vmem [shape: f32[3,32,32], index: 6, kind: input, shape index: {}]
  %s7 = inlined_call_operand.vmem [shape: f32[4,5,1,32], index: 7, kind: input, shape index: {}]
  %s8 = inlined_call_operand.vmem [shape: f32[32,32], index: 8, kind: output, shape index: {0}]
  %s9 = inlined_call_operand.hbm [shape: f32[1,32], index: 9, kind: output, shape index: {1}]
  %10 = xla_tuple %s8, %s9
  %s11 = sld [smem:[#allocation0]]
  $region50: #{hetero_gnn_forward.1} parent=0
    _
  %s13 = ssub.s32 1, %s11
  %s14 = scalar_select 0, %s13, %s11
  %v15 = vstv %s1
  %16 = vst [vmem:[#allocation2] sm:$0x1] %v15
  $region1: #{hetero_gnn_forward.1} parent=0
    #allocation3 [shape = 'u8[512]{0}', space=vmem, size = 0x400, scoped, tag = 'output window, operand 1, single buffered']
    #allocation4 [shape = 's32[1]{0}', space=sflag, size = 0x4, scoped, tag = 'scoped memory for hetero_gnn_forward.1']
    %17 = vsyncpa [#allocation4], 0
    // Predicated region
    $region2: #{hetero_gnn_forward.1} parent=1 // pred_check
      _
    $region3: #{hetero_gnn_forward.1} parent=1 // pred_check_branch
      %19 = sbr.rel (0) target = $region5
    $region4: #{hetero_gnn_forward.1} parent=1 // pred_region
      _
    $region5: #{hetero_gnn_forward.1} parent=1 // pred_fallthru
      _
    // Predicated region
    $region6: #{hetero_gnn_forward.1} parent=1 // pred_check
      _
    $region7: #{hetero_gnn_forward.1} parent=1 // pred_check_branch
      %21 = sbr.rel (0) target = $region9
    $region8: #{hetero_gnn_forward.1} parent=1 // pred_region
      _
    $region9: #{hetero_gnn_forward.1} parent=1 // pred_fallthru
      _
    // Predicated region
    $region10: #{hetero_gnn_forward.1} parent=1 // pred_check
      _
    $region11: #{hetero_gnn_forward.1} parent=1 // pred_check_branch
      %23 = sbr.rel (0) target = $region13
    $region12: #{hetero_gnn_forward.1} parent=1 // pred_region
      _
    $region13: #{hetero_gnn_forward.1} parent=1 // pred_fallthru
      _
    // Predicated region
    $region14: #{hetero_gnn_forward.1} parent=1 // pred_check
      _
    $region15: #{hetero_gnn_forward.1} parent=1 // pred_check_branch
      %25 = sbr.rel (0) target = $region17
    $region16: #{hetero_gnn_forward.1} parent=1 // pred_region
      _
    $region17: #{hetero_gnn_forward.1} parent=1 // pred_fallthru
      _
    // Predicated region
    $region18: #{hetero_gnn_forward.1} parent=1 // pred_check
      _
    $region19: #{hetero_gnn_forward.1} parent=1 // pred_check_branch
      %27 = sbr.rel (0) target = $region21
    $region20: #{hetero_gnn_forward.1} parent=1 // pred_region
      _
    $region21: #{hetero_gnn_forward.1} parent=1 // pred_fallthru
      _
    // Predicated region
    $region22: #{hetero_gnn_forward.1} parent=1 // pred_check
      _
    $region23: #{hetero_gnn_forward.1} parent=1 // pred_check_branch
      %29 = sbr.rel (0) target = $region25
    $region24: #{hetero_gnn_forward.1} parent=1 // pred_region
      _
    $region25: #{hetero_gnn_forward.1} parent=1 // pred_fallthru
      _
    // Predicated region
    $region26: #{hetero_gnn_forward.1} parent=1 // pred_check
      _
    $region27: #{hetero_gnn_forward.1} parent=1 // pred_check_branch
      %31 = sbr.rel (0) target = $region29
    $region28: #{hetero_gnn_forward.1} parent=1 // pred_region
      _
    $region29: #{hetero_gnn_forward.1} parent=1 // pred_fallthru
      _
    // Predicated region
    $region30: #{hetero_gnn_forward.1} parent=1 // pred_check
      _
    $region31: #{hetero_gnn_forward.1} parent=1 // pred_check_branch
      %33 = sbr.rel (0) target = $region33
    $region32: #{hetero_gnn_forward.1} parent=1 // pred_region
      _
    $region33: #{hetero_gnn_forward.1} parent=1 // pred_fallthru
      _
    %v34 = vld [vmem:[%s2] sm:$0xff]
    %v35 = vld [vmem:[%s2 + $0x8] sm:$0xff]
    %v36 = vld [vmem:[%s2 + $0x10] sm:$0xff]
    %v37 = vld [vmem:[%s2 + $0x18] sm:$0xff]
    %v38 = vlaneseq
    %v39 = vshrl.u32 %v38, 7
    %v40 = vadd.s32 %v39, 8
    %v41 = vadd.s32 %v39, 16
    %v42 = vadd.s32 %v39, 24
    %vm43 = vcmp.lt.s32.totalorder %v39, 16
    %vm44 = vcmp.lt.s32.totalorder %v40, 16
    %vm45 = vcmp.lt.s32.totalorder %v41, 16
    %vm46 = vcmp.lt.s32.totalorder %v42, 16
    %v47 = vsel %vm43, 1, 0
    %v48 = vsel %vm44, 1, 0
    %v49 = vsel %vm45, 1, 0
    %v50 = vsel %vm46, 1, 0
    %v51 = vcvt.s32.f32 %v47
    %v52 = vcvt.s32.f32 %v48
    %v53 = vcvt.s32.f32 %v49
    %v54 = vcvt.s32.f32 %v50
    %v55 = vsub.f32 1.0, %v51
    %v56 = vsub.f32 1.0, %v52
    %v57 = vsub.f32 1.0, %v53
    %v58 = vsub.f32 1.0, %v54
    %v59 = vld [vmem:[%s0] sm:$0xff]
    %v60 = vld [vmem:[%s0 + $0x8] sm:$0xff]
    %v61 = vld [vmem:[%s0 + $0x10] sm:$0xff]
    %v62 = vld [vmem:[%s0 + $0x18] sm:$0xff]
    %v63 = vld [vmem:[%s3] sm:$0xff]
    %v64 = vld [vmem:[%s3 + $0x8] sm:$0x3f]
    %vm65 = vcmask 113664
    %v67 = vsel %vm65, %v59, 0
    %v70 = vsel %vm65, %v60, 0
    %v73 = vsel %vm65, %v61, 0
    %v76 = vsel %vm65, %v62, 0
    %vm78 = vcmask 1045504
    %v80 = vsel %vm78, %v64, 0
    %82 = vmatpush.msra.mxu0 0.0
    %83 = vmatpush.msra.mxu0 0.0
    %84 = vmatpush.msra.mxu0 0.0
    %85 = vmatpush.msra.mxu0 0.0
    %86 = vmatpush.msra.mxu0 0.0
    %87 = vmatpush.msra.mxu0 0.0
    %88 = vmatpush.msra.mxu0 0.0
    %89 = vmatpush.msra.mxu0 0.0
    %90 = vmatpush.msra.mxu0 0.0
    %91 = vmatpush.msra.mxu0 0.0
    %92 = vmatpush.msra.mxu0 0.0
    %93 = vmatpush.msra.mxu0 0.0
    %94 = vmatpush.msra.mxu0 0.0
    %95 = vmatpush.msra.mxu0 0.0
    %96 = vmatpush.msra.mxu0 %v80
    %97 = vmatpush.msra.mxu0 %v63
    %98 = vmatmul.f32.gmra.mxu0 %v67
    %v99 = vpop.f32.mrf.mxu0
    %v100 = vadd.f32 0.0, %v99
    %101 = vmatmul.f32.gmra.mxu0 %v70
    %v102 = vpop.f32.mrf.mxu0
    %v103 = vadd.f32 0.0, %v102
    %104 = vmatmul.f32.gmra.mxu0 %v73
    %v105 = vpop.f32.mrf.mxu0
    %v106 = vadd.f32 0.0, %v105
    %107 = vmatmul.f32.gmra.mxu0 %v76
    %v108 = vpop.f32.mrf.mxu0
    %v109 = vadd.f32 0.0, %v108
    %110 = vdwg.mxu0
    %v111 = vld [vmem:[%s7] sm:$0x1]
    %v113 = vperm.slane %v111, 0
    %v115 = vmul.f32 %v51, %v113
    %v116 = vmul.f32 %v52, %v113
    %v117 = vmul.f32 %v53, %v113
    %v118 = vmul.f32 %v54, %v113
    %s119 = scalar_lea.vmem %s7, 1
    %v120 = vld [vmem:[%s119] sm:$0x1]
    %v122 = vperm.slane %v120, 0
    %v124 = vmul.f32 %v55, %v122
    %v125 = vmul.f32 %v56, %v122
    %v126 = vmul.f32 %v57, %v122
    %v127 = vmul.f32 %v58, %v122
    %v128 = vadd.f32 %v115, %v124
    %v129 = vadd.f32 %v116, %v125
    %v130 = vadd.f32 %v117, %v126
    %v131 = vadd.f32 %v118, %v127
    %v132 = vadd.f32 %v100, %v128
    %v133 = vadd.f32 %v103, %v129
    %v134 = vadd.f32 %v106, %v130
    %v135 = vadd.f32 %v109, %v131
    %s136 = scalar_lea.vmem %s7, 2
    %v137 = vld [vmem:[%s136] sm:$0x1]
    %v139 = vperm.slane %v137, 0
    %v141 = vmul.f32 %v51, %v139
    %v142 = vmul.f32 %v52, %v139
    %v143 = vmul.f32 %v53, %v139
    %v144 = vmul.f32 %v54, %v139
    %s145 = scalar_lea.vmem %s7, 3
    %v146 = vld [vmem:[%s145] sm:$0x1]
    %v148 = vperm.slane %v146, 0
    %v150 = vmul.f32 %v55, %v148
    %v151 = vmul.f32 %v56, %v148
    %v152 = vmul.f32 %v57, %v148
    %v153 = vmul.f32 %v58, %v148
    %v154 = vadd.f32 %v141, %v150
    %v155 = vadd.f32 %v142, %v151
    %v156 = vadd.f32 %v143, %v152
    %v157 = vadd.f32 %v144, %v153
    %162 = vrot.lane.b32.xlu0 %v154, 32
    %v163 = vpop.permute.xlu0 %162
    %164 = vrot.lane.b32.xlu0 %v155, 32
    %v165 = vpop.permute.xlu0 %164
    %166 = vrot.lane.b32.xlu0 %v156, 32
    %v167 = vpop.permute.xlu0 %166
    %168 = vrot.lane.b32.xlu0 %v157, 32
    %v169 = vpop.permute.xlu0 %168
    %v174 = vadd.f32 %v100, %v163
    %v175 = vadd.f32 %v103, %v165
    %v176 = vadd.f32 %v106, %v167
    %v177 = vadd.f32 %v109, %v169
    %182 = vrot.lane.b32.xlu0 %v174, 96
    %v183 = vpop.permute.xlu0 %182
    %184 = vrot.lane.b32.xlu0 %v175, 96
    %v185 = vpop.permute.xlu0 %184
    %186 = vrot.lane.b32.xlu0 %v176, 96
    %v187 = vpop.permute.xlu0 %186
    %188 = vrot.lane.b32.xlu0 %v177, 96
    %v189 = vpop.permute.xlu0 %188
    %vm194 = vcmask 261120
    %v196 = vsel %vm194, %v34, 0
    %v199 = vsel %vm194, %v35, 0
    %v202 = vsel %vm194, %v36, 0
    %v205 = vsel %vm194, %v37, 0
    %207 = vmatpush.msra.mxu0 0.0
    %208 = vmatpush.msra.mxu0 0.0
    %209 = vmatpush.msra.mxu0 0.0
    %210 = vmatpush.msra.mxu0 0.0
    %211 = vmatpush.msra.mxu0 0.0
    %212 = vmatpush.msra.mxu0 0.0
    %213 = vmatpush.msra.mxu0 0.0
    %214 = vmatpush.msra.mxu0 0.0
    %215 = vmatpush.msra.mxu0 0.0
    %216 = vmatpush.msra.mxu0 0.0
    %217 = vmatpush.msra.mxu0 0.0
    %218 = vmatpush.msra.mxu0 0.0
    %219 = vmatpush.msra.mxu0 %v189
    %220 = vmatpush.msra.mxu0 %v187
    %221 = vmatpush.msra.mxu0 %v185
    %222 = vmatpush.msra.mxu0 %v183
    %223 = vmatmul.f32.gmra.mxu0 %v196
    %v224 = vpop.f32.mrf.mxu0
    %v225 = vadd.f32 0.0, %v224
    %226 = vmatmul.f32.gmra.mxu0 %v199
    %v227 = vpop.f32.mrf.mxu0
    %v228 = vadd.f32 0.0, %v227
    %229 = vmatmul.f32.gmra.mxu0 %v202
    %v230 = vpop.f32.mrf.mxu0
    %v231 = vadd.f32 0.0, %v230
    %232 = vmatmul.f32.gmra.mxu0 %v205
    %v233 = vpop.f32.mrf.mxu0
    %v234 = vadd.f32 0.0, %v233
    %235 = vdwg.mxu0
    %v236 = vld [vmem:[#allocation2] sm:$0x1]
    %v237 = vld [vmem:[%s4] sm:$0x1]
    %239 = vset.pattern.permute.xlu0 0
    %240 = vperm.xlu0 %239, %v236
    %v241 = vpop.permute.xlu0 %240
    %v243 = vperm.slane %v241, 0
    %v244 = vmul.f32 %v243, %v237
    %s245 = scalar_lea.vmem %s7, 4
    %v246 = vld [vmem:[%s245] sm:$0x1]
    %v247 = vadd.f32 %v244, %v246
    %v248 = vadd.f32 %v132, %v225
    %v249 = vadd.f32 %v133, %v228
    %v250 = vadd.f32 %v134, %v231
    %v251 = vadd.f32 %v135, %v234
    %v253 = vperm.slane %v247, 0
    %v255 = vadd.f32 %v248, %v253
    %v256 = vadd.f32 %v249, %v253
    %v257 = vadd.f32 %v250, %v253
    %v258 = vadd.f32 %v251, %v253
    %v259 = vmax.f32 %v255, 0.0
    %v260 = vmax.f32 %v256, 0.0
    %v261 = vmax.f32 %v257, 0.0
    %v262 = vmax.f32 %v258, 0.0
    %v263 = vmax.f32 %v247, 0.0
    %v264 = vld [vmem:[%s5] sm:$0xff]
    %v265 = vld [vmem:[%s5 + $0x8] sm:$0xff]
    %v266 = vld [vmem:[%s5 + $0x10] sm:$0xff]
    %v267 = vld [vmem:[%s5 + $0x18] sm:$0xff]
    %v269 = vsel %vm194, %v259, 0
    %v272 = vsel %vm194, %v260, 0
    %v275 = vsel %vm194, %v261, 0
    %v278 = vsel %vm194, %v262, 0
    %280 = vmatpush.msra.mxu0 0.0
    %281 = vmatpush.msra.mxu0 0.0
    %282 = vmatpush.msra.mxu0 0.0
    %283 = vmatpush.msra.mxu0 0.0
    %284 = vmatpush.msra.mxu0 0.0
    %285 = vmatpush.msra.mxu0 0.0
    %286 = vmatpush.msra.mxu0 0.0
    %287 = vmatpush.msra.mxu0 0.0
    %288 = vmatpush.msra.mxu0 0.0
    %289 = vmatpush.msra.mxu0 0.0
    %290 = vmatpush.msra.mxu0 0.0
    %291 = vmatpush.msra.mxu0 0.0
    %292 = vmatpush.msra.mxu0 %v267
    %293 = vmatpush.msra.mxu0 %v266
    %294 = vmatpush.msra.mxu0 %v265
    %295 = vmatpush.msra.mxu0 %v264
    %296 = vmatmul.f32.gmra.mxu0 %v269
    %v297 = vpop.f32.mrf.mxu0
    %v298 = vadd.f32 0.0, %v297
    %299 = vmatmul.f32.gmra.mxu0 %v272
    %v300 = vpop.f32.mrf.mxu0
    %v301 = vadd.f32 0.0, %v300
    %302 = vmatmul.f32.gmra.mxu0 %v275
    %v303 = vpop.f32.mrf.mxu0
    %v304 = vadd.f32 0.0, %v303
    %305 = vmatmul.f32.gmra.mxu0 %v278
    %v306 = vpop.f32.mrf.mxu0
    %v307 = vadd.f32 0.0, %v306
    %308 = vdwg.mxu0
    %s309 = scalar_lea.vmem %s7, 5
    %v310 = vld [vmem:[%s309] sm:$0x1]
    %v312 = vperm.slane %v310, 0
    %v314 = vadd.f32 %v298, %v312
    %v315 = vadd.f32 %v301, %v312
    %v316 = vadd.f32 %v304, %v312
    %v317 = vadd.f32 %v307, %v312
    %v318 = vmul.f32 %v51, %v314
    %v319 = vmul.f32 %v52, %v315
    %v320 = vmul.f32 %v53, %v316
    %v321 = vmul.f32 %v54, %v317
    %s322 = scalar_lea.vmem %s7, 6
    %v323 = vld [vmem:[%s322] sm:$0x1]
    %v325 = vperm.slane %v323, 0
    %326 = vrot.lane.b32.xlu0 %v325, 32
    %v327 = vpop.permute.xlu0 %326
    %v329 = vadd.f32 %v298, %v327
    %v330 = vadd.f32 %v301, %v327
    %v331 = vadd.f32 %v304, %v327
    %v332 = vadd.f32 %v307, %v327
    %v333 = vmul.f32 %v55, %v329
    %v334 = vmul.f32 %v56, %v330
    %v335 = vmul.f32 %v57, %v331
    %v336 = vmul.f32 %v58, %v332
    %341 = vrot.lane.b32.xlu0 %v333, 96
    %v342 = vpop.permute.xlu0 %341
    %343 = vrot.lane.b32.xlu0 %v334, 96
    %v344 = vpop.permute.xlu0 %343
    %345 = vrot.lane.b32.xlu0 %v335, 96
    %v346 = vpop.permute.xlu0 %345
    %347 = vrot.lane.b32.xlu0 %v336, 96
    %v348 = vpop.permute.xlu0 %347
    %v353 = vadd.f32 %v318, %v342
    %v354 = vadd.f32 %v319, %v344
    %v355 = vadd.f32 %v320, %v346
    %v356 = vadd.f32 %v321, %v348
    %s357 = scalar_lea.vmem %s7, 7
    %v358 = vld [vmem:[%s357] sm:$0x1]
    %v360 = vperm.slane %v358, 0
    %361 = vrot.lane.b32.xlu0 %v360, 64
    %v362 = vpop.permute.xlu0 %361
    %v364 = vadd.f32 %v298, %v362
    %v365 = vadd.f32 %v301, %v362
    %v366 = vadd.f32 %v304, %v362
    %v367 = vadd.f32 %v307, %v362
    %v368 = vmul.f32 %v51, %v364
    %v369 = vmul.f32 %v52, %v365
    %v370 = vmul.f32 %v53, %v366
    %v371 = vmul.f32 %v54, %v367
    %s372 = scalar_lea.vmem %s7, 8
    %v373 = vld [vmem:[%s372] sm:$0x1]
    %v375 = vperm.slane %v373, 0
    %376 = vrot.lane.b32.xlu0 %v375, 96
    %v377 = vpop.permute.xlu0 %376
    %v379 = vadd.f32 %v298, %v377
    %v380 = vadd.f32 %v301, %v377
    %v381 = vadd.f32 %v304, %v377
    %v382 = vadd.f32 %v307, %v377
    %v383 = vmul.f32 %v55, %v379
    %v384 = vmul.f32 %v56, %v380
    %v385 = vmul.f32 %v57, %v381
    %v386 = vmul.f32 %v58, %v382
    %391 = vrot.lane.b32.xlu0 %v383, 96
    %v392 = vpop.permute.xlu0 %391
    %393 = vrot.lane.b32.xlu0 %v384, 96
    %v394 = vpop.permute.xlu0 %393
    %395 = vrot.lane.b32.xlu0 %v385, 96
    %v396 = vpop.permute.xlu0 %395
    %397 = vrot.lane.b32.xlu0 %v386, 96
    %v398 = vpop.permute.xlu0 %397
    %v403 = vadd.f32 %v368, %v392
    %v404 = vadd.f32 %v369, %v394
    %v405 = vadd.f32 %v370, %v396
    %v406 = vadd.f32 %v371, %v398
    %411 = vrot.lane.b32.xlu0 %v403, 64
    %v412 = vpop.permute.xlu0 %411
    %413 = vrot.lane.b32.xlu0 %v404, 64
    %v414 = vpop.permute.xlu0 %413
    %415 = vrot.lane.b32.xlu0 %v405, 64
    %v416 = vpop.permute.xlu0 %415
    %417 = vrot.lane.b32.xlu0 %v406, 64
    %v418 = vpop.permute.xlu0 %417
    %423 = vmatpush.msra.mxu0 0.0
    %424 = vmatpush.msra.mxu0 0.0
    %425 = vmatpush.msra.mxu0 0.0
    %426 = vmatpush.msra.mxu0 0.0
    %427 = vmatpush.msra.mxu0 0.0
    %428 = vmatpush.msra.mxu0 0.0
    %429 = vmatpush.msra.mxu0 0.0
    %430 = vmatpush.msra.mxu0 0.0
    %431 = vmatpush.msra.mxu0 0.0
    %432 = vmatpush.msra.mxu0 0.0
    %433 = vmatpush.msra.mxu0 0.0
    %434 = vmatpush.msra.mxu0 0.0
    %435 = vmatpush.msra.mxu0 %v418
    %436 = vmatpush.msra.mxu0 %v416
    %437 = vmatpush.msra.mxu0 %v414
    %438 = vmatpush.msra.mxu0 %v412
    %439 = vmatmul.f32.gmra.mxu0 %v196
    %v440 = vpop.f32.mrf.mxu0
    %v441 = vadd.f32 0.0, %v440
    %442 = vmatmul.f32.gmra.mxu0 %v199
    %v443 = vpop.f32.mrf.mxu0
    %v444 = vadd.f32 0.0, %v443
    %445 = vmatmul.f32.gmra.mxu0 %v202
    %v446 = vpop.f32.mrf.mxu0
    %v447 = vadd.f32 0.0, %v446
    %448 = vmatmul.f32.gmra.mxu0 %v205
    %v449 = vpop.f32.mrf.mxu0
    %v450 = vadd.f32 0.0, %v449
    %451 = vdwg.mxu0
    %v452 = vld [vmem:[%s6] sm:$0xff]
    %v453 = vld [vmem:[%s6 + $0x8] sm:$0xff]
    %v454 = vld [vmem:[%s6 + $0x10] sm:$0xff]
    %v455 = vld [vmem:[%s6 + $0x18] sm:$0xff]
    %s456 = scalar_lea.vmem %s7, 9
    %v457 = vld [vmem:[%s456] sm:$0x1]
    %v459 = vsel %vm194, %v263, 0
    %461 = vmatpush.msra.mxu0 0.0
    %462 = vmatpush.msra.mxu0 0.0
    %463 = vmatpush.msra.mxu0 0.0
    %464 = vmatpush.msra.mxu0 0.0
    %465 = vmatpush.msra.mxu0 0.0
    %466 = vmatpush.msra.mxu0 0.0
    %467 = vmatpush.msra.mxu0 0.0
    %468 = vmatpush.msra.mxu0 0.0
    %469 = vmatpush.msra.mxu0 0.0
    %470 = vmatpush.msra.mxu0 0.0
    %471 = vmatpush.msra.mxu0 0.0
    %472 = vmatpush.msra.mxu0 0.0
    %473 = vmatpush.msra.mxu0 %v455
    %474 = vmatpush.msra.mxu0 %v454
    %475 = vmatpush.msra.mxu0 %v453
    %476 = vmatpush.msra.mxu0 %v452
    %477 = vmatmul.f32.gmra.mxu0 %v459
    %v478 = vpop.f32.mrf.mxu0
    %v479 = vadd.f32 %v457, %v478
    %480 = vdwg.mxu0
    %v481 = vadd.f32 %v353, %v441
    %v482 = vadd.f32 %v354, %v444
    %v483 = vadd.f32 %v355, %v447
    %v484 = vadd.f32 %v356, %v450
    %v485 = vperm.slane %v479, 0
    %v486 = vadd.f32 %v481, %v485
    %v487 = vadd.f32 %v482, %v485
    %v488 = vadd.f32 %v483, %v485
    %v489 = vadd.f32 %v484, %v485
    %v490 = vmax.f32 %v486, 0.0
    %v491 = vmax.f32 %v487, 0.0
    %v492 = vmax.f32 %v488, 0.0
    %v493 = vmax.f32 %v489, 0.0
    %v494 = vmax.f32 %v479, 0.0
    %s495 = scalar_lea.vmem %s5, 32
    %v496 = vld [vmem:[%s495] sm:$0xff]
    %v497 = vld [vmem:[%s495 + $0x8] sm:$0xff]
    %v498 = vld [vmem:[%s495 + $0x10] sm:$0xff]
    %v499 = vld [vmem:[%s495 + $0x18] sm:$0xff]
    %v501 = vsel %vm194, %v490, 0
    %v504 = vsel %vm194, %v491, 0
    %v507 = vsel %vm194, %v492, 0
    %v510 = vsel %vm194, %v493, 0
    %512 = vmatpush.msra.mxu0 0.0
    %513 = vmatpush.msra.mxu0 0.0
    %514 = vmatpush.msra.mxu0 0.0
    %515 = vmatpush.msra.mxu0 0.0
    %516 = vmatpush.msra.mxu0 0.0
    %517 = vmatpush.msra.mxu0 0.0
    %518 = vmatpush.msra.mxu0 0.0
    %519 = vmatpush.msra.mxu0 0.0
    %520 = vmatpush.msra.mxu0 0.0
    %521 = vmatpush.msra.mxu0 0.0
    %522 = vmatpush.msra.mxu0 0.0
    %523 = vmatpush.msra.mxu0 0.0
    %524 = vmatpush.msra.mxu0 %v499
    %525 = vmatpush.msra.mxu0 %v498
    %526 = vmatpush.msra.mxu0 %v497
    %527 = vmatpush.msra.mxu0 %v496
    %528 = vmatmul.f32.gmra.mxu0 %v501
    %v529 = vpop.f32.mrf.mxu0
    %v530 = vadd.f32 0.0, %v529
    %531 = vmatmul.f32.gmra.mxu0 %v504
    %v532 = vpop.f32.mrf.mxu0
    %v533 = vadd.f32 0.0, %v532
    %534 = vmatmul.f32.gmra.mxu0 %v507
    %v535 = vpop.f32.mrf.mxu0
    %v536 = vadd.f32 0.0, %v535
    %537 = vmatmul.f32.gmra.mxu0 %v510
    %v538 = vpop.f32.mrf.mxu0
    %v539 = vadd.f32 0.0, %v538
    %540 = vdwg.mxu0
    %s541 = scalar_lea.vmem %s7, 10
    %v542 = vld [vmem:[%s541] sm:$0x1]
    %v544 = vperm.slane %v542, 0
    %v546 = vadd.f32 %v530, %v544
    %v547 = vadd.f32 %v533, %v544
    %v548 = vadd.f32 %v536, %v544
    %v549 = vadd.f32 %v539, %v544
    %v550 = vmul.f32 %v51, %v546
    %v551 = vmul.f32 %v52, %v547
    %v552 = vmul.f32 %v53, %v548
    %v553 = vmul.f32 %v54, %v549
    %s554 = scalar_lea.vmem %s7, 11
    %v555 = vld [vmem:[%s554] sm:$0x1]
    %v557 = vperm.slane %v555, 0
    %558 = vrot.lane.b32.xlu0 %v557, 32
    %v559 = vpop.permute.xlu0 %558
    %v561 = vadd.f32 %v530, %v559
    %v562 = vadd.f32 %v533, %v559
    %v563 = vadd.f32 %v536, %v559
    %v564 = vadd.f32 %v539, %v559
    %v565 = vmul.f32 %v55, %v561
    %v566 = vmul.f32 %v56, %v562
    %v567 = vmul.f32 %v57, %v563
    %v568 = vmul.f32 %v58, %v564
    %573 = vrot.lane.b32.xlu0 %v565, 96
    %v574 = vpop.permute.xlu0 %573
    %575 = vrot.lane.b32.xlu0 %v566, 96
    %v576 = vpop.permute.xlu0 %575
    %577 = vrot.lane.b32.xlu0 %v567, 96
    %v578 = vpop.permute.xlu0 %577
    %579 = vrot.lane.b32.xlu0 %v568, 96
    %v580 = vpop.permute.xlu0 %579
    %v585 = vadd.f32 %v550, %v574
    %v586 = vadd.f32 %v551, %v576
    %v587 = vadd.f32 %v552, %v578
    %v588 = vadd.f32 %v553, %v580
    %s589 = scalar_lea.vmem %s7, 12
    %v590 = vld [vmem:[%s589] sm:$0x1]
    %v592 = vperm.slane %v590, 0
    %593 = vrot.lane.b32.xlu0 %v592, 64
    %v594 = vpop.permute.xlu0 %593
    %v596 = vadd.f32 %v530, %v594
    %v597 = vadd.f32 %v533, %v594
    %v598 = vadd.f32 %v536, %v594
    %v599 = vadd.f32 %v539, %v594
    %v600 = vmul.f32 %v51, %v596
    %v601 = vmul.f32 %v52, %v597
    %v602 = vmul.f32 %v53, %v598
    %v603 = vmul.f32 %v54, %v599
    %s604 = scalar_lea.vmem %s7, 13
    %v605 = vld [vmem:[%s604] sm:$0x1]
    %v607 = vperm.slane %v605, 0
    %608 = vrot.lane.b32.xlu0 %v607, 96
    %v609 = vpop.permute.xlu0 %608
    %v611 = vadd.f32 %v530, %v609
    %v612 = vadd.f32 %v533, %v609
    %v613 = vadd.f32 %v536, %v609
    %v614 = vadd.f32 %v539, %v609
    %v615 = vmul.f32 %v55, %v611
    %v616 = vmul.f32 %v56, %v612
    %v617 = vmul.f32 %v57, %v613
    %v618 = vmul.f32 %v58, %v614
    %623 = vrot.lane.b32.xlu0 %v615, 96
    %v624 = vpop.permute.xlu0 %623
    %625 = vrot.lane.b32.xlu0 %v616, 96
    %v626 = vpop.permute.xlu0 %625
    %627 = vrot.lane.b32.xlu0 %v617, 96
    %v628 = vpop.permute.xlu0 %627
    %629 = vrot.lane.b32.xlu0 %v618, 96
    %v630 = vpop.permute.xlu0 %629
    %v635 = vadd.f32 %v600, %v624
    %v636 = vadd.f32 %v601, %v626
    %v637 = vadd.f32 %v602, %v628
    %v638 = vadd.f32 %v603, %v630
    %643 = vrot.lane.b32.xlu0 %v635, 64
    %v644 = vpop.permute.xlu0 %643
    %645 = vrot.lane.b32.xlu0 %v636, 64
    %v646 = vpop.permute.xlu0 %645
    %647 = vrot.lane.b32.xlu0 %v637, 64
    %v648 = vpop.permute.xlu0 %647
    %649 = vrot.lane.b32.xlu0 %v638, 64
    %v650 = vpop.permute.xlu0 %649
    %655 = vmatpush.msra.mxu0 0.0
    %656 = vmatpush.msra.mxu0 0.0
    %657 = vmatpush.msra.mxu0 0.0
    %658 = vmatpush.msra.mxu0 0.0
    %659 = vmatpush.msra.mxu0 0.0
    %660 = vmatpush.msra.mxu0 0.0
    %661 = vmatpush.msra.mxu0 0.0
    %662 = vmatpush.msra.mxu0 0.0
    %663 = vmatpush.msra.mxu0 0.0
    %664 = vmatpush.msra.mxu0 0.0
    %665 = vmatpush.msra.mxu0 0.0
    %666 = vmatpush.msra.mxu0 0.0
    %667 = vmatpush.msra.mxu0 %v650
    %668 = vmatpush.msra.mxu0 %v648
    %669 = vmatpush.msra.mxu0 %v646
    %670 = vmatpush.msra.mxu0 %v644
    %671 = vmatmul.f32.gmra.mxu0 %v196
    %v672 = vpop.f32.mrf.mxu0
    %v673 = vadd.f32 0.0, %v672
    %674 = vmatmul.f32.gmra.mxu0 %v199
    %v675 = vpop.f32.mrf.mxu0
    %v676 = vadd.f32 0.0, %v675
    %677 = vmatmul.f32.gmra.mxu0 %v202
    %v678 = vpop.f32.mrf.mxu0
    %v679 = vadd.f32 0.0, %v678
    %680 = vmatmul.f32.gmra.mxu0 %v205
    %v681 = vpop.f32.mrf.mxu0
    %v682 = vadd.f32 0.0, %v681
    %683 = vdwg.mxu0
    %s684 = scalar_lea.vmem %s6, 32
    %v685 = vld [vmem:[%s684] sm:$0xff]
    %v686 = vld [vmem:[%s684 + $0x8] sm:$0xff]
    %v687 = vld [vmem:[%s684 + $0x10] sm:$0xff]
    %v688 = vld [vmem:[%s684 + $0x18] sm:$0xff]
    %s689 = scalar_lea.vmem %s7, 14
    %v690 = vld [vmem:[%s689] sm:$0x1]
    %v692 = vsel %vm194, %v494, 0
    %694 = vmatpush.msra.mxu0 0.0
    %695 = vmatpush.msra.mxu0 0.0
    %696 = vmatpush.msra.mxu0 0.0
    %697 = vmatpush.msra.mxu0 0.0
    %698 = vmatpush.msra.mxu0 0.0
    %699 = vmatpush.msra.mxu0 0.0
    %700 = vmatpush.msra.mxu0 0.0
    %701 = vmatpush.msra.mxu0 0.0
    %702 = vmatpush.msra.mxu0 0.0
    %703 = vmatpush.msra.mxu0 0.0
    %704 = vmatpush.msra.mxu0 0.0
    %705 = vmatpush.msra.mxu0 0.0
    %706 = vmatpush.msra.mxu0 %v688
    %707 = vmatpush.msra.mxu0 %v687
    %708 = vmatpush.msra.mxu0 %v686
    %709 = vmatpush.msra.mxu0 %v685
    %710 = vmatmul.f32.gmra.mxu0 %v692
    %v711 = vpop.f32.mrf.mxu0
    %v712 = vadd.f32 %v690, %v711
    %713 = vdwg.mxu0
    %v714 = vadd.f32 %v585, %v673
    %v715 = vadd.f32 %v586, %v676
    %v716 = vadd.f32 %v587, %v679
    %v717 = vadd.f32 %v588, %v682
    %v718 = vperm.slane %v712, 0
    %v719 = vadd.f32 %v714, %v718
    %v720 = vadd.f32 %v715, %v718
    %v721 = vadd.f32 %v716, %v718
    %v722 = vadd.f32 %v717, %v718
    %v723 = vmax.f32 %v719, 0.0
    %v724 = vmax.f32 %v720, 0.0
    %v725 = vmax.f32 %v721, 0.0
    %v726 = vmax.f32 %v722, 0.0
    %v727 = vmax.f32 %v712, 0.0
    %s728 = scalar_lea.vmem %s5, 64
    %v729 = vld [vmem:[%s728] sm:$0xff]
    %v730 = vld [vmem:[%s728 + $0x8] sm:$0xff]
    %v731 = vld [vmem:[%s728 + $0x10] sm:$0xff]
    %v732 = vld [vmem:[%s728 + $0x18] sm:$0xff]
    %v734 = vsel %vm194, %v723, 0
    %v737 = vsel %vm194, %v724, 0
    %v740 = vsel %vm194, %v725, 0
    %v743 = vsel %vm194, %v726, 0
    %745 = vmatpush.msra.mxu0 0.0
    %746 = vmatpush.msra.mxu0 0.0
    %747 = vmatpush.msra.mxu0 0.0
    %748 = vmatpush.msra.mxu0 0.0
    %749 = vmatpush.msra.mxu0 0.0
    %750 = vmatpush.msra.mxu0 0.0
    %751 = vmatpush.msra.mxu0 0.0
    %752 = vmatpush.msra.mxu0 0.0
    %753 = vmatpush.msra.mxu0 0.0
    %754 = vmatpush.msra.mxu0 0.0
    %755 = vmatpush.msra.mxu0 0.0
    %756 = vmatpush.msra.mxu0 0.0
    %757 = vmatpush.msra.mxu0 %v732
    %758 = vmatpush.msra.mxu0 %v731
    %759 = vmatpush.msra.mxu0 %v730
    %760 = vmatpush.msra.mxu0 %v729
    %761 = vmatmul.f32.gmra.mxu0 %v734
    %v762 = vpop.f32.mrf.mxu0
    %v763 = vadd.f32 0.0, %v762
    %764 = vmatmul.f32.gmra.mxu0 %v737
    %v765 = vpop.f32.mrf.mxu0
    %v766 = vadd.f32 0.0, %v765
    %767 = vmatmul.f32.gmra.mxu0 %v740
    %v768 = vpop.f32.mrf.mxu0
    %v769 = vadd.f32 0.0, %v768
    %770 = vmatmul.f32.gmra.mxu0 %v743
    %v771 = vpop.f32.mrf.mxu0
    %v772 = vadd.f32 0.0, %v771
    %773 = vdwg.mxu0
    %s774 = scalar_lea.vmem %s7, 15
    %v775 = vld [vmem:[%s774] sm:$0x1]
    %v777 = vperm.slane %v775, 0
    %v779 = vadd.f32 %v763, %v777
    %v780 = vadd.f32 %v766, %v777
    %v781 = vadd.f32 %v769, %v777
    %v782 = vadd.f32 %v772, %v777
    %v783 = vmul.f32 %v51, %v779
    %v784 = vmul.f32 %v52, %v780
    %v785 = vmul.f32 %v53, %v781
    %v786 = vmul.f32 %v54, %v782
    %s787 = scalar_lea.vmem %s7, 16
    %v788 = vld [vmem:[%s787] sm:$0x1]
    %v790 = vperm.slane %v788, 0
    %791 = vrot.lane.b32.xlu0 %v790, 32
    %v792 = vpop.permute.xlu0 %791
    %v794 = vadd.f32 %v763, %v792
    %v795 = vadd.f32 %v766, %v792
    %v796 = vadd.f32 %v769, %v792
    %v797 = vadd.f32 %v772, %v792
    %v798 = vmul.f32 %v55, %v794
    %v799 = vmul.f32 %v56, %v795
    %v800 = vmul.f32 %v57, %v796
    %v801 = vmul.f32 %v58, %v797
    %806 = vrot.lane.b32.xlu0 %v798, 96
    %v807 = vpop.permute.xlu0 %806
    %808 = vrot.lane.b32.xlu0 %v799, 96
    %v809 = vpop.permute.xlu0 %808
    %810 = vrot.lane.b32.xlu0 %v800, 96
    %v811 = vpop.permute.xlu0 %810
    %812 = vrot.lane.b32.xlu0 %v801, 96
    %v813 = vpop.permute.xlu0 %812
    %v818 = vadd.f32 %v783, %v807
    %v819 = vadd.f32 %v784, %v809
    %v820 = vadd.f32 %v785, %v811
    %v821 = vadd.f32 %v786, %v813
    %s822 = scalar_lea.vmem %s7, 17
    %v823 = vld [vmem:[%s822] sm:$0x1]
    %v825 = vperm.slane %v823, 0
    %826 = vrot.lane.b32.xlu0 %v825, 64
    %v827 = vpop.permute.xlu0 %826
    %v829 = vadd.f32 %v763, %v827
    %v830 = vadd.f32 %v766, %v827
    %v831 = vadd.f32 %v769, %v827
    %v832 = vadd.f32 %v772, %v827
    %v833 = vmul.f32 %v51, %v829
    %v834 = vmul.f32 %v52, %v830
    %v835 = vmul.f32 %v53, %v831
    %v836 = vmul.f32 %v54, %v832
    %s837 = scalar_lea.vmem %s7, 18
    %v838 = vld [vmem:[%s837] sm:$0x1]
    %v840 = vperm.slane %v838, 0
    %841 = vrot.lane.b32.xlu0 %v840, 96
    %v842 = vpop.permute.xlu0 %841
    %v844 = vadd.f32 %v763, %v842
    %v845 = vadd.f32 %v766, %v842
    %v846 = vadd.f32 %v769, %v842
    %v847 = vadd.f32 %v772, %v842
    %v848 = vmul.f32 %v55, %v844
    %v849 = vmul.f32 %v56, %v845
    %v850 = vmul.f32 %v57, %v846
    %v851 = vmul.f32 %v58, %v847
    %856 = vrot.lane.b32.xlu0 %v848, 96
    %v857 = vpop.permute.xlu0 %856
    %858 = vrot.lane.b32.xlu0 %v849, 96
    %v859 = vpop.permute.xlu0 %858
    %860 = vrot.lane.b32.xlu0 %v850, 96
    %v861 = vpop.permute.xlu0 %860
    %862 = vrot.lane.b32.xlu0 %v851, 96
    %v863 = vpop.permute.xlu0 %862
    %v868 = vadd.f32 %v833, %v857
    %v869 = vadd.f32 %v834, %v859
    %v870 = vadd.f32 %v835, %v861
    %v871 = vadd.f32 %v836, %v863
    %876 = vrot.lane.b32.xlu0 %v868, 64
    %v877 = vpop.permute.xlu0 %876
    %878 = vrot.lane.b32.xlu0 %v869, 64
    %v879 = vpop.permute.xlu0 %878
    %880 = vrot.lane.b32.xlu0 %v870, 64
    %v881 = vpop.permute.xlu0 %880
    %882 = vrot.lane.b32.xlu0 %v871, 64
    %v883 = vpop.permute.xlu0 %882
    %888 = vmatpush.msra.mxu0 0.0
    %889 = vmatpush.msra.mxu0 0.0
    %890 = vmatpush.msra.mxu0 0.0
    %891 = vmatpush.msra.mxu0 0.0
    %892 = vmatpush.msra.mxu0 0.0
    %893 = vmatpush.msra.mxu0 0.0
    %894 = vmatpush.msra.mxu0 0.0
    %895 = vmatpush.msra.mxu0 0.0
    %896 = vmatpush.msra.mxu0 0.0
    %897 = vmatpush.msra.mxu0 0.0
    %898 = vmatpush.msra.mxu0 0.0
    %899 = vmatpush.msra.mxu0 0.0
    %900 = vmatpush.msra.mxu0 %v883
    %901 = vmatpush.msra.mxu0 %v881
    %902 = vmatpush.msra.mxu0 %v879
    %903 = vmatpush.msra.mxu0 %v877
    %904 = vmatmul.f32.gmra.mxu0 %v196
    %v905 = vpop.f32.mrf.mxu0
    %v906 = vadd.f32 0.0, %v905
    %907 = vmatmul.f32.gmra.mxu0 %v199
    %v908 = vpop.f32.mrf.mxu0
    %v909 = vadd.f32 0.0, %v908
    %910 = vmatmul.f32.gmra.mxu0 %v202
    %v911 = vpop.f32.mrf.mxu0
    %v912 = vadd.f32 0.0, %v911
    %913 = vmatmul.f32.gmra.mxu0 %v205
    %v914 = vpop.f32.mrf.mxu0
    %v915 = vadd.f32 0.0, %v914
    %916 = vdwg.mxu0
    %s917 = scalar_lea.vmem %s6, 64
    %v918 = vld [vmem:[%s917] sm:$0xff]
    %v919 = vld [vmem:[%s917 + $0x8] sm:$0xff]
    %v920 = vld [vmem:[%s917 + $0x10] sm:$0xff]
    %v921 = vld [vmem:[%s917 + $0x18] sm:$0xff]
    %s922 = scalar_lea.vmem %s7, 19
    %v923 = vld [vmem:[%s922] sm:$0x1]
    %v925 = vsel %vm194, %v727, 0
    %927 = vmatpush.msra.mxu0 0.0
    %928 = vmatpush.msra.mxu0 0.0
    %929 = vmatpush.msra.mxu0 0.0
    %930 = vmatpush.msra.mxu0 0.0
    %931 = vmatpush.msra.mxu0 0.0
    %932 = vmatpush.msra.mxu0 0.0
    %933 = vmatpush.msra.mxu0 0.0
    %934 = vmatpush.msra.mxu0 0.0
    %935 = vmatpush.msra.mxu0 0.0
    %936 = vmatpush.msra.mxu0 0.0
    %937 = vmatpush.msra.mxu0 0.0
    %938 = vmatpush.msra.mxu0 0.0
    %939 = vmatpush.msra.mxu0 %v921
    %940 = vmatpush.msra.mxu0 %v920
    %941 = vmatpush.msra.mxu0 %v919
    %942 = vmatpush.msra.mxu0 %v918
    %943 = vmatmul.f32.gmra.mxu0 %v925
    %v944 = vpop.f32.mrf.mxu0
    %v945 = vadd.f32 %v923, %v944
    %946 = vdwg.mxu0
    %v947 = vadd.f32 %v818, %v906
    %v948 = vadd.f32 %v819, %v909
    %v949 = vadd.f32 %v820, %v912
    %v950 = vadd.f32 %v821, %v915
    %v951 = vperm.slane %v945, 0
    %v952 = vadd.f32 %v947, %v951
    %v953 = vadd.f32 %v948, %v951
    %v954 = vadd.f32 %v949, %v951
    %v955 = vadd.f32 %v950, %v951
    %956 = vst.msk [vmem:[%s8] sm:$0xff] %vm194, %v952
    %957 = vst.msk [vmem:[%s8 + $0x8] sm:$0xff] %vm194, %v953
    %958 = vst.msk [vmem:[%s8 + $0x10] sm:$0xff] %vm194, %v954
    %959 = vst.msk [vmem:[%s8 + $0x18] sm:$0xff] %vm194, %v955
    %vm960 = vcmask 253952
    %961 = vst.msk [vmem:[#allocation3] sm:$0x1] %vm960, %v945
    // Predicated region
    $region34: #{hetero_gnn_forward.1} parent=1 // pred_check
      _
    $region35: #{hetero_gnn_forward.1} parent=1 // pred_check_branch
      %963 = sbr.rel (0) target = $region37
    $region36: #{hetero_gnn_forward.1} parent=1 // pred_region
      _
    $region37: #{hetero_gnn_forward.1} parent=1 // pred_fallthru
      _
    // Predicated region
    $region38: #{hetero_gnn_forward.1} parent=1 // pred_check
      _
    $region39: #{hetero_gnn_forward.1} parent=1 // pred_check_branch
      %965 = sbr.rel (0) target = $region41
    $region40: #{hetero_gnn_forward.1} parent=1 // pred_region
      %967 = vsyncadd [#allocation4], 0
      %s969 = sshll.u32 [#allocation3], 4
      %s970 = int_to_ptr.vmem [resolvable:$true] %s969
      %s971 = sshll.u32 %s9, 4
      %s972 = int_to_ptr.hbm [resolvable:$true] %s971
      %974 = dma.vmem_to_hbm [thread:$0]  %s970, 16, %s972, [#allocation4]
    $region41: #{hetero_gnn_forward.1} parent=1 // pred_fallthru
      _
    // Predicated region
    $region42: #{hetero_gnn_forward.1} parent=1 // pred_check
      _
    $region43: #{hetero_gnn_forward.1} parent=1 // pred_check_branch
      %976 = sbr.rel (0) target = $region45
    $region44: #{hetero_gnn_forward.1} parent=1 // pred_region
      _
    $region45: #{hetero_gnn_forward.1} parent=1 // pred_fallthru
      _
    // Predicated region
    $region46: #{hetero_gnn_forward.1} parent=1 // pred_check
      _
    $region47: #{hetero_gnn_forward.1} parent=1 // pred_check_branch
      %978 = sbr.rel (0) target = $region49
    $region48: #{hetero_gnn_forward.1} parent=1 // pred_region
      %980 = dma.done [#allocation4], 16
    $region49: #{hetero_gnn_forward.1} parent=1 // pred_fallthru
      _
    %981 = vsyncpa [#allocation4], 1

</llo_original>
